<compile_context>
chip_gen: v5e
topology: v5e:2x2
jax: 0.10.0
libtpu: 0.0.40
codegen_flags: <defaults>
</compile_context>

<pallas_src>
import jax
import jax.numpy as jnp
from jax.experimental import pallas as pl
from jax.experimental.pallas import tpu as pltpu

# 2 inputs + 1 output, each double-buffered, must fit under this. Safe on
# v5e / v6e (128 MiB physical) and v7x (64 MiB physical, 32 MiB scoped default).
_VMEM_SOFT_CAP = 28 << 20


def _clip_points_l2_kernel(budget_ref, pc_ref, ori_ref, out_ref):
    """One grid step == one batch element.

    budget_ref : (1,) f32 in SMEM (scalar prefetch)
    pc_ref / ori_ref / out_ref : (3, K) slab of one batch element in VMEM
    """
    ori = ori_ref[...].astype(jnp.float32)
    d = pc_ref[...].astype(jnp.float32) - ori

    # Global sum of squares over the whole (3, K) slab (sublane + XLU lane
    # reduce), then one exact sqrt/divide per batch element to match torch.
    ssq = jnp.sum(d * d)
    norm = jnp.sqrt(ssq)
    scale = jnp.minimum(budget_ref[0] / (norm + 1e-9), 1.0)

    out_ref[...] = (ori + d * scale).astype(out_ref.dtype)


def _estimated_vmem_bytes(K, itemsize):
    """Per-grid-step VMEM working set: 3 buffers x 2 (double-buffered)."""
    lanes = pl.cdiv(K, 128) * 128
    # A (3, K) minor block pads sublanes up to the dtype's native tile
    # (8 rows f32, 16 rows bf16, 32 rows int8/fp8) -> ~32 B per lane per buffer.
    native_sublanes = {4: 8, 2: 16, 1: 32}.get(itemsize, 8)
    per_buffer = native_sublanes * lanes * itemsize
    return 6 * per_buffer


def _clip_points_l2_jnp(pc, ori_pc, budget):
    """Pure-JAX fallback (identical math) for pathologically large K."""
    diff = pc - ori_pc
    norm = jnp.sqrt(jnp.sum(diff.astype(jnp.float32) ** 2, axis=(1, 2)))
    scale = jnp.minimum(budget / (norm + 1e-9), 1.0).astype(pc.dtype)
    return ori_pc + diff * scale[:, None, None]


def clip_points_l2(pc, ori_pc, budget):
    """Pallas TPU implementation of ClipPointsL2.forward.

    Args:
      pc, ori_pc: float arrays of shape [B, 3, K] (f32 or bf16).
      budget: python float (or scalar array), global per-batch L2 budget.
    """
    B, C, K = pc.shape
    assert C == 3, "channel axis must be 3 (xyz)"
    assert ori_pc.shape == pc.shape

    itemsize = jnp.dtype(pc.dtype).itemsize
    est_vmem = _estimated_vmem_bytes(K, itemsize)
    if est_vmem > _VMEM_SOFT_CAP:
        # TODO(synk): add a K-tiled two-phase Pallas path for point clouds with
        # >~130k points; fall back to pure JAX there for now.
        return _clip_points_l2_jnp(pc, ori_pc, jnp.float32(budget))

    budget_arr = jnp.asarray(budget, jnp.float32).reshape((1,))

    # Full-extent minor dims -> exempt from the (8,128) divisibility rule for
    # any dtype, no padding needed, lane-masked tail stores only when K%128!=0.
    spec = pl.BlockSpec((None, C, K), lambda b, budget: (b, 0, 0))

    N = C * K
    cost = pl.CostEstimate(
        flops=5 * B * N,                       # sub, square, reduce-add, mul, add
        transcendentals=B,                     # one sqrt per batch element
        bytes_accessed=3 * B * N * itemsize,   # 2 reads + 1 write
    )

    out = pl.pallas_call(
        _clip_points_l2_kernel,
        out_shape=jax.ShapeDtypeStruct((B, C, K), pc.dtype),
        grid_spec=pltpu.PrefetchScalarGridSpec(
            num_scalar_prefetch=1,             # budget -> SMEM
            grid=(B,),
            in_specs=[spec, spec],
            out_specs=spec,
        ),
        compiler_params=pltpu.CompilerParams(
            dimension_semantics=("parallel",),
            vmem_limit_bytes=_VMEM_SOFT_CAP if est_vmem > (16 << 20) else None,
        ),
        cost_estimate=cost,
    )(budget_arr, pc, ori_pc)
    return out


def _reference(pc, ori_pc, budget):
    # Pure-JAX reference mirroring the torch semantics (f32 math).
    diff = pc - ori_pc
    norm = jnp.sqrt(jnp.sum(diff ** 2, axis=(1, 2)))
    scale = jnp.minimum(budget / (norm + 1e-9), 1.0)
    return ori_pc + diff * scale[:, None, None]


if __name__ == "__main__":
    key = jax.random.PRNGKey(0)
    k1, k2, k3, k4, k5, k6 = jax.random.split(key, 6)

    # Case 1: B=2, K=1024, f32.  Batch 0 stays inside the budget (scale clamps
    # to 1), batch 1 gets clipped.
    B, K = 2, 1024
    ori_pc = jax.random.normal(k1, (B, 3, K), dtype=jnp.float32)
    noise = jax.random.normal(k2, (B, 3, K), dtype=jnp.float32)
    pc = ori_pc + noise * jnp.array([0.01, 1.0], jnp.float32)[:, None, None]
    out = jax.block_until_ready(clip_points_l2(pc, ori_pc, 1.0))
    ref = _reference(pc, ori_pc, 1.0)
    assert out.shape == (B, 3, K) and out.dtype == pc.dtype
    assert jnp.allclose(out, ref, atol=1e-5, rtol=1e-5), "mismatch vs reference"

    # Case 2: K not a multiple of 128 (ragged lane tail -> masked stores, no
    # wrapper padding), odd batch size.
    B2, K2 = 3, 1000
    ori2 = jax.random.normal(k3, (B2, 3, K2), dtype=jnp.float32)
    pc2 = ori2 + 0.3 * jax.random.normal(k4, (B2, 3, K2), dtype=jnp.float32)
    out2 = jax.block_until_ready(clip_points_l2(pc2, ori2, 0.5))
    ref2 = _reference(pc2, ori2, 0.5)
    assert out2.shape == (B2, 3, K2)
    assert jnp.allclose(out2, ref2, atol=1e-5, rtol=1e-5), "mismatch (ragged K)"

    # Case 3: bf16 inputs (full-extent minor dims keep the layout legal for any
    # dtype; math runs in f32 inside the kernel, output cast back to bf16).
    B3, K3 = 2, 256
    ori3f = jax.random.normal(k5, (B3, 3, K3), dtype=jnp.float32)
    pc3f = ori3f + jax.random.normal(k6, (B3, 3, K3), dtype=jnp.float32)
    ori3 = ori3f.astype(jnp.bfloat16)
    pc3 = pc3f.astype(jnp.bfloat16)
    out3 = jax.block_until_ready(clip_points_l2(pc3, ori3, 0.8))
    ref3 = _reference(pc3.astype(jnp.float32), ori3.astype(jnp.float32), 0.8)
    assert out3.dtype == jnp.bfloat16
    assert jnp.allclose(out3.astype(jnp.float32), ref3, atol=3e-2, rtol=3e-2), \
        "mismatch (bf16)"

    print("KERNEL_OK")
</pallas_src>

<mosaic_0001>
module attributes {stable_mosaic.version = 11 : i64} {
  func.func @_clip_points_l2_kernel(%arg0: i32, %arg1: memref<1xf32, #tpu.memory_space<smem>>, %arg2: memref<1x3x1024xf32, #tpu.memory_space<vmem>>, %arg3: memref<1x3x1024xf32, #tpu.memory_space<vmem>>, %arg4: memref<1x3x1024xf32, #tpu.memory_space<vmem>>) attributes {dimension_semantics = [#tpu.dimension_semantics<parallel>], iteration_bounds = array<i64: 2>, scalar_prefetch = 1 : i64, scratch_operands = 0 : i64, tpu.core_type = #tpu.core_type<tc>, window_params = [{transform_indices = @transform_0, window_bounds = array<i64: 1, 3, 1024>}, {transform_indices = @transform_1, window_bounds = array<i64: 1, 3, 1024>}, {transform_indices = @transform_2, window_bounds = array<i64: 1, 3, 1024>}]} {
    %c0 = arith.constant 0 : index
    %c0_0 = arith.constant 0 : index
    %c0_1 = arith.constant 0 : index
    %0 = vector.load %arg3[%c0, %c0_0, %c0_1] : memref<1x3x1024xf32, #tpu.memory_space<vmem>>, vector<1x3x1024xf32>
    %1 = vector.shape_cast %0 : vector<1x3x1024xf32> to vector<3x1024xf32>
    %c0_2 = arith.constant 0 : index
    %c0_3 = arith.constant 0 : index
    %c0_4 = arith.constant 0 : index
    %2 = vector.load %arg2[%c0_2, %c0_3, %c0_4] : memref<1x3x1024xf32, #tpu.memory_space<vmem>>, vector<1x3x1024xf32>
    %3 = vector.shape_cast %2 : vector<1x3x1024xf32> to vector<3x1024xf32>
    %4 = arith.subf %3, %1 : vector<3x1024xf32>
    %5 = arith.mulf %4, %4 : vector<3x1024xf32>
    %6 = vector.shape_cast %5 : vector<3x1024xf32> to vector<1x3x1024xf32>
    %cst = arith.constant dense<0.000000e+00> : vector<1xf32>
    %7 = vector.multi_reduction <add>, %6, %cst [1, 2] : vector<1x3x1024xf32> to vector<1xf32>
    %8 = vector.shape_cast %7 : vector<1xf32> to vector<1x1x1xf32>
    %9 = vector.extract %8[0, 0, 0] : f32 from vector<1x1x1xf32>
    %10 = math.sqrt %9 : f32
    %c0_5 = arith.constant 0 : index
    %11 = memref.load %arg1[%c0_5] : memref<1xf32, #tpu.memory_space<smem>>
    %cst_6 = arith.constant 9.99999971E-10 : f32
    %12 = arith.addf %10, %cst_6 : f32
    %13 = arith.divf %11, %12 : f32
    %cst_7 = arith.constant 1.000000e+00 : f32
    %14 = arith.minimumf %13, %cst_7 : f32
    %15 = vector.broadcast %14 : f32 to vector<3x1024xf32>
    %16 = arith.mulf %4, %15 : vector<3x1024xf32>
    %17 = arith.addf %1, %16 : vector<3x1024xf32>
    %c0_8 = arith.constant 0 : index
    %c0_9 = arith.constant 0 : index
    %c0_10 = arith.constant 0 : index
    %18 = vector.load %arg4[%c0_8, %c0_9, %c0_10] : memref<1x3x1024xf32, #tpu.memory_space<vmem>>, vector<1x3x1024xf32>
    %19 = vector.shape_cast %18 : vector<1x3x1024xf32> to vector<3x1024xf32>
    %20 = vector.shape_cast %17 : vector<3x1024xf32> to vector<1x3x1024xf32>
    tpu.vector_store %arg4[%c0_8, %c0_9, %c0_10], %20 {strides = array<i32>} : memref<1x3x1024xf32, #tpu.memory_space<vmem>>, vector<1x3x1024xf32>,
    return
  }
  func.func @transform_0(%arg0: i32, %arg1: memref<1xf32, #tpu.memory_space<smem>>) -> (i32, i32, i32) {
    %c0_i32 = arith.constant 0 : i32
    %c0_i32_0 = arith.constant 0 : i32
    %c0_i32_1 = arith.constant 0 : i32
    return %arg0, %c0_i32, %c0_i32_0 : i32, i32, i32
  }
  func.func @transform_1(%arg0: i32, %arg1: memref<1xf32, #tpu.memory_space<smem>>) -> (i32, i32, i32) {
    %c0_i32 = arith.constant 0 : i32
    %c0_i32_0 = arith.constant 0 : i32
    %c0_i32_1 = arith.constant 0 : i32
    return %arg0, %c0_i32, %c0_i32_0 : i32, i32, i32
  }
  func.func @transform_2(%arg0: i32, %arg1: memref<1xf32, #tpu.memory_space<smem>>) -> (i32, i32, i32) {
    %c0_i32 = arith.constant 0 : i32
    %c0_i32_0 = arith.constant 0 : i32
    %c0_i32_1 = arith.constant 0 : i32
    return %arg0, %c0_i32, %c0_i32_0 : i32, i32, i32
  }
}

</mosaic_0001>

<llo_original>
// kernel: tpu_custom_call.1
$region0: #{tpu_custom_call.1}
  #allocation0 [shape = 'u32[]', space=smem, size = 0x4, offset = 0x4, fixed_abs, tag = 'smem constant byte address 0x4 - core index']
  #allocation1 [shape = 'u32[72,128]{1,0:T(1,128)}', space=vmem, size = 0x9000, scoped, tag = 'internal scratch']
  #allocation2 [shape = 's32[1]{0}', space=sflag, size = 0x4, scoped, tag = 'scoped memory for tpu_custom_call.1']
  #allocation3 [shape = 'f32[1]{0:T(128)S(6)}', space=smem, size = 0x200, scoped, tag = 'prefetched SMEM operand 0']
  %s0 = inlined_call_operand.<no memory space> [shape: f32[1], index: 0, kind: input, shape index: {}]
  %s1 = inlined_call_operand.vmem [shape: f32[2,3,1024], index: 1, kind: input, shape index: {}]
  %s2 = inlined_call_operand.vmem [shape: f32[2,3,1024], index: 2, kind: input, shape index: {}]
  %s3 = inlined_call_operand.vmem [shape: f32[2,3,1024], index: 3, kind: output, shape index: {}]
  %s4 = sld [smem:[#allocation0]]
  $region41: #{tpu_custom_call.1} parent=0
    _
  %s6 = ssub.s32 1, %s4
  %s7 = scalar_select 0, %s6, %s4
  %8 = sst [smem:[#allocation3]] %s0
  loop: start=0, step=1, limit=4
  $region2: #{tpu_custom_call.1} parent=0 // loop_pre_header
    _
  $region3: #{tpu_custom_call.1} parent=0 // loop_header
    %s10 = sphi 0, %s14
    %p11 = scmp.ge.s32.totalorder %s10, 4
    %s20 = sphi 0, %s22
    %s23 = sphi 0, %s20
    %s24 = sphi 0, %s23
    %s40 = sphi 0, %s24
    %s46 = sphi 0, %s48
    %s49 = sphi 0, %s46
    %s50 = sphi 0, %s49
    %s66 = sphi 0, %s50
    %s72 = sphi 0, %s74
    %s75 = sphi 0, %s72
    %s76 = sphi 0, %s75
    %s92 = sphi 0, %s76
  $region4: #{tpu_custom_call.1} parent=0 // loop_header_branch
    %13 = sbr.rel (%p11) target = $region8
  $region5: #{tpu_custom_call.1} parent=0 // loop_body
    %s15 = ssub.s32 %s10, 1
    %s16 = ssub.s32 %s10, 2
    %s17 = sadd.s32 %s10, 1
    %s18 = ssub.s32 %s10, %s17
    %p19 = scmp.eq.s32.totalorder %s18, 0
    %s21 = sadd.s32 %s20, 1
    %s22 = scalar_select %p19, %s20, %s21
    %p25 = pneg %p19
    %p26 = scmp.eq.s32.totalorder %s10, 1
    %p27 = por %p25, %p26
    %p28 = scmp.ne.s32.totalorder %s20, %s23
    %p29 = scmp.eq.s32.totalorder %s10, 0
    %p30 = por %p28, %p29
    %p31 = scmp.ne.s32.totalorder %s20, %s23
    %p32 = scmp.eq.s32.totalorder %s15, 1
    %p33 = por %p31, %p32
    %p34 = scmp.ne.s32.totalorder %s23, %s24
    %p35 = scmp.eq.s32.totalorder %s15, 0
    %p36 = por %p34, %p35
    %p37 = scmp.ne.s32.totalorder %s23, %s24
    %p38 = scmp.eq.s32.totalorder %s16, 1
    %p39 = por %p37, %p38
    %p41 = scmp.ne.s32.totalorder %s24, %s40
    %p42 = scmp.eq.s32.totalorder %s16, 0
    %p43 = por %p41, %p42
    %s44 = ssub.s32 %s10, %s17
    %p45 = scmp.eq.s32.totalorder %s44, 0
    %s47 = sadd.s32 %s46, 1
    %s48 = scalar_select %p45, %s46, %s47
    %p51 = pneg %p45
    %p52 = scmp.eq.s32.totalorder %s10, 1
    %p53 = por %p51, %p52
    %p54 = scmp.ne.s32.totalorder %s46, %s49
    %p55 = scmp.eq.s32.totalorder %s10, 0
    %p56 = por %p54, %p55
    %p57 = scmp.ne.s32.totalorder %s46, %s49
    %p58 = scmp.eq.s32.totalorder %s15, 1
    %p59 = por %p57, %p58
    %p60 = scmp.ne.s32.totalorder %s49, %s50
    %p61 = scmp.eq.s32.totalorder %s15, 0
    %p62 = por %p60, %p61
    %p63 = scmp.ne.s32.totalorder %s49, %s50
    %p64 = scmp.eq.s32.totalorder %s16, 1
    %p65 = por %p63, %p64
    %p67 = scmp.ne.s32.totalorder %s50, %s66
    %p68 = scmp.eq.s32.totalorder %s16, 0
    %p69 = por %p67, %p68
    %s70 = ssub.s32 %s10, %s17
    %p71 = scmp.eq.s32.totalorder %s70, 0
    %s73 = sadd.s32 %s72, 1
    %s74 = scalar_select %p71, %s72, %s73
    %p77 = pneg %p71
    %p78 = scmp.eq.s32.totalorder %s10, 1
    %p79 = por %p77, %p78
    %p80 = scmp.ne.s32.totalorder %s72, %s75
    %p81 = scmp.eq.s32.totalorder %s10, 0
    %p82 = por %p80, %p81
    %p83 = scmp.ne.s32.totalorder %s72, %s75
    %p84 = scmp.eq.s32.totalorder %s15, 1
    %p85 = por %p83, %p84
    %p86 = scmp.ne.s32.totalorder %s75, %s76
    %p87 = scmp.eq.s32.totalorder %s15, 0
    %p88 = por %p86, %p87
    %p89 = scmp.ne.s32.totalorder %s75, %s76
    %p90 = scmp.eq.s32.totalorder %s16, 1
    %p91 = por %p89, %p90
    %p93 = scmp.ne.s32.totalorder %s76, %s92
    %p94 = scmp.eq.s32.totalorder %s16, 0
    %p95 = por %p93, %p94
    %p96 = scmp.le.s32.totalorder 1, %s10
    %p97 = scmp.lt.s32.totalorder %s10, 3
    %p98 = pnand %p96, %p97
    %p99 = pneg %p98
    // Predicated region
    $region9: #{tpu_custom_call.1} parent=5 // pred_check
      _
    $region10: #{tpu_custom_call.1} parent=5 // pred_check_branch
      %101 = sbr.rel (%p98) target = $region12
    $region11: #{tpu_custom_call.1} parent=5 // pred_region
      %s102 = ssub.s32 %s10, 1
    $region12: #{tpu_custom_call.1} parent=5 // pred_fallthru
      _
    %p103 = scmp.lt.s32.totalorder %s10, 2
    // Predicated region
    $region13: #{tpu_custom_call.1} parent=5 // pred_check
      %p104 = pneg %p103
    $region14: #{tpu_custom_call.1} parent=5 // pred_check_branch
      %106 = sbr.rel (%p104) target = $region16
    $region15: #{tpu_custom_call.1} parent=5 // pred_region
      // Predicated region
      $region17: #{tpu_custom_call.1} parent=15 // pred_check
        %p107 = pneg %p30
      $region18: #{tpu_custom_call.1} parent=15 // pred_check_branch
        %109 = sbr.rel (%p107) target = $region20
      $region19: #{tpu_custom_call.1} parent=15 // pred_region
        %p110 = scmp.lt.s32.totalorder %s10, 1
        %s111 = scalar_select %p110, %s10, 1
        %s112 = smul.addr %s111, 8
        %s113 = smul.addr %s112, 4
        %s114 = scalar_lea.vmem %s1, %s113
      $region20: #{tpu_custom_call.1} parent=15 // pred_fallthru
        _
      // Predicated region
      $region21: #{tpu_custom_call.1} parent=15 // pred_check
        %p115 = pneg %p56
      $region22: #{tpu_custom_call.1} parent=15 // pred_check_branch
        %117 = sbr.rel (%p115) target = $region24
      $region23: #{tpu_custom_call.1} parent=15 // pred_region
        %p118 = scmp.lt.s32.totalorder %s10, 1
        %s119 = scalar_select %p118, %s10, 1
        %s120 = smul.addr %s119, 8
        %s121 = smul.addr %s120, 4
        %s122 = scalar_lea.vmem %s2, %s121
      $region24: #{tpu_custom_call.1} parent=15 // pred_fallthru
        _
    $region16: #{tpu_custom_call.1} parent=5 // pred_fallthru
      _
    %p123 = scmp.le.s32.totalorder 1, %s10
    %p124 = scmp.lt.s32.totalorder %s10, 3
    %p125 = pnand %p123, %p124
    %p126 = pneg %p125
    // Predicated region
    $region25: #{tpu_custom_call.1} parent=5 // pred_check
      _
    $region26: #{tpu_custom_call.1} parent=5 // pred_check_branch
      %128 = sbr.rel (%p125) target = $region28
    $region27: #{tpu_custom_call.1} parent=5 // pred_region
      %s129 = ssub.s32 %s10, 1
      %p130 = scmp.lt.s32.totalorder %s15, 1
      %s131 = scalar_select %p130, %s15, 1
      %s132 = smul.addr %s131, 8
      %s133 = smul.addr %s132, 4
      %s134 = scalar_lea.vmem %s1, %s133
      %p135 = pneg %p36
      %p136 = pneg %p33
      %p137 = scmp.lt.s32.totalorder %s15, 1
      %s138 = scalar_select %p137, %s15, 1
      %s139 = smul.addr %s138, 8
      %s140 = smul.addr %s139, 4
      %s141 = scalar_lea.vmem %s2, %s140
      %p142 = pneg %p62
      %p143 = pneg %p59
      %p144 = pneg %p88
      %p145 = pneg %p85
      %p146 = scmp.lt.s32.totalorder %s15, 1
      %s147 = scalar_select %p146, %s15, 1
      %s148 = smul.addr %s147, 8
      %s149 = smul.addr %s148, 4
      %s150 = scalar_lea.vmem %s3, %s149
      %p151 = scmp.lt.s32.totalorder %s15, 1
      %s152 = scalar_select %p151, %s15, 1
      %s153 = smul.addr %s152, 8
      %s154 = smul.addr %s153, 4
      %s155 = scalar_lea.vmem %s1, %s154
      %p156 = scmp.lt.s32.totalorder %s15, 1
      %s157 = scalar_select %p156, %s15, 1
      %s158 = smul.addr %s157, 8
      %s159 = smul.addr %s158, 4
      %s160 = scalar_lea.vmem %s2, %s159
      %p161 = scmp.lt.s32.totalorder %s15, 1
      %s162 = scalar_select %p161, %s15, 1
      %s163 = smul.addr %s162, 8
      %s164 = smul.addr %s163, 4
      %s165 = scalar_lea.vmem %s3, %s164
      %v166 = vld [vmem:[%s160] sm:$0x77]
      %v167 = vld [vmem:[%s160 + $0x8] sm:$0x77]
      %v168 = vld [vmem:[%s160 + $0x10] sm:$0x77]
      %v169 = vld [vmem:[%s160 + $0x18] sm:$0x77]
      %v170 = vld [vmem:[%s155] sm:$0x77]
      %v171 = vld [vmem:[%s155 + $0x8] sm:$0x77]
      %v172 = vld [vmem:[%s155 + $0x10] sm:$0x77]
      %v173 = vld [vmem:[%s155 + $0x18] sm:$0x77]
      %v174 = vsub.f32 %v170, %v166
      %v175 = vsub.f32 %v171, %v167
      %v176 = vsub.f32 %v172, %v168
      %v177 = vsub.f32 %v173, %v169
      %v178 = vmul.f32 %v174, %v174
      %v179 = vmul.f32 %v175, %v175
      %v180 = vmul.f32 %v176, %v176
      %v181 = vmul.f32 %v177, %v177
      %186 = vst [vmem:[#allocation1] ss:$2 sm:$0xff] %v178
      %s187 = scalar_lea.vmem [#allocation1], 16
      %188 = vst [vmem:[%s187] ss:$2 sm:$0xff] %v179
      %s189 = scalar_lea.vmem [#allocation1], 32
      %190 = vst [vmem:[%s189] ss:$2 sm:$0xff] %v180
      %s191 = scalar_lea.vmem [#allocation1], 48
      %192 = vst [vmem:[%s191] ss:$2 sm:$0xff] %v181
      %v193 = vld.sshfl [vmem:[#allocation1] sm:$0xff pattern:$0x75316420]
      %v194 = vld.sshfl [vmem:[#allocation1 + $0x8] sm:$0xff pattern:$0x75316420]
      %v195 = vld.sshfl [vmem:[#allocation1 + $0x10] sm:$0xff pattern:$0x75316420]
      %v196 = vld.sshfl [vmem:[#allocation1 + $0x18] sm:$0xff pattern:$0x75316420]
      %v197 = vld.sshfl [vmem:[#allocation1 + $0x20] sm:$0xff pattern:$0x75316420]
      %v198 = vld.sshfl [vmem:[#allocation1 + $0x28] sm:$0xff pattern:$0x75316420]
      %v199 = vld.sshfl [vmem:[#allocation1 + $0x30] sm:$0xff pattern:$0x75316420]
      %v200 = vld.sshfl [vmem:[#allocation1 + $0x38] sm:$0xff pattern:$0x75316420]
      %vm209 = vcmask 1042432
      %v210 = vsel %vm209, %v193, 0.0
      %v211 = vsel %vm209, %v194, 0.0
      %v212 = vadd.f32 %v210, %v211
      %v213 = vsel %vm209, %v195, 0.0
      %v214 = vadd.f32 %v212, %v213
      %v215 = vsel %vm209, %v196, 0.0
      %v216 = vadd.f32 %v214, %v215
      %v217 = vsel %vm209, %v197, 0.0
      %v218 = vadd.f32 %v216, %v217
      %v219 = vsel %vm209, %v198, 0.0
      %v220 = vadd.f32 %v218, %v219
      %v221 = vsel %vm209, %v199, 0.0
      %v222 = vadd.f32 %v220, %v221
      %v223 = vsel %vm209, %v200, 0.0
      %v224 = vadd.f32 %v222, %v223
      %225 = vadd.xlane.f32.xlu0 %v224
      %v226 = vpop.xlane.xlu0 %225
      %v227 = vrot.slane %v226, 4
      %v228 = vadd.f32 %v226, %v227
      %v229 = vrot.slane %v228, 2
      %v230 = vadd.f32 %v228, %v229
      %v231 = vrot.slane %v230, 1
      %v232 = vadd.f32 %v230, %v231
      %s233 = vtos %v232
      %v234 = vstv %s233
      %v235 = vrsqrt.pop %v234
      %v236 = vmul.f32 %v235, %v234
      %v237 = vmul.f32 %v236, %v235
      %v238 = vmul.f32 0.5, %v237
      %v239 = vsub.f32 1.5, %v238
      %v240 = vmul.f32 %v235, %v239
      %v241 = vmul.f32 %v234, %v240
      %vm242 = vcmp.eq.f32.partialorder %v234, inf
      %v243 = vsel %vm242, %v234, %v241
      %vm244 = vcmp.eq.f32.partialorder %v234, 0.0
      %v245 = vand.u32 %v234, 2147483648
      %v246 = vsel %vm244, %v245, %v243
      %s247 = vtos %v246
      %s248 = sld [smem:[#allocation3]]
      %s249 = sadd.f32 %s247, 1e-09
      %v250 = vstv %s249
      %v251 = vrcp.pop %v250
      %v252 = vmul.f32 %v250, %v251
      %v253 = vsub.f32 1.0, %v252
      %v254 = vmul.f32 %v251, %v253
      %v255 = vadd.f32 %v251, %v254
      %vm256 = vweird.f32 %v250
      %vm257 = vweird.f32 %v251
      %vm258 = vmor %vm256, %vm257
      %v259 = vsel %vm258, %v251, %v255
      %v260 = vand.u32 2147483647, %v250
      %vm261 = vcmp.eq.f32.partialorder %v260, 8.507059e+37
      %v262 = vand.u32 %v250, 2147483648
      %v263 = vor.u32 1.1754944e-38, %v262
      %v264 = vsel %vm261, %v263, %v259
      %s265 = vtos %v264
      %s266 = smul.f32 %s248, %s265
      %s267 = smin.f32 %s266, 1.0
      %v268 = vstv %s267
      %v269 = vmul.f32 %v174, %v268
      %v270 = vmul.f32 %v175, %v268
      %v271 = vmul.f32 %v176, %v268
      %v272 = vmul.f32 %v177, %v268
      %v273 = vadd.f32 %v166, %v269
      %v274 = vadd.f32 %v167, %v270
      %v275 = vadd.f32 %v168, %v271
      %v276 = vadd.f32 %v169, %v272
      %277 = vst [vmem:[%s165] sm:$0x77] %v273
      %278 = vst [vmem:[%s165 + $0x8] sm:$0x77] %v274
      %279 = vst [vmem:[%s165 + $0x10] sm:$0x77] %v275
      %280 = vst [vmem:[%s165 + $0x18] sm:$0x77] %v276
      %p281 = scmp.lt.s32.totalorder %s15, 1
      %s282 = scalar_select %p281, %s15, 1
      %s283 = smul.addr %s282, 8
      %s284 = smul.addr %s283, 4
      %s285 = scalar_lea.vmem %s3, %s284
      // Predicated region
      $region29: #{tpu_custom_call.1} parent=27 // pred_check
        %p286 = pneg %p85
      $region30: #{tpu_custom_call.1} parent=27 // pred_check_branch
        %288 = sbr.rel (%p286) target = $region32
      $region31: #{tpu_custom_call.1} parent=27 // pred_region
        _
      $region32: #{tpu_custom_call.1} parent=27 // pred_fallthru
        _
    $region28: #{tpu_custom_call.1} parent=5 // pred_fallthru
      _
    %p289 = scmp.le.s32.totalorder 2, %s10
    // Predicated region
    $region33: #{tpu_custom_call.1} parent=5 // pred_check
      %p290 = pneg %p289
    $region34: #{tpu_custom_call.1} parent=5 // pred_check_branch
      %292 = sbr.rel (%p290) target = $region36
    $region35: #{tpu_custom_call.1} parent=5 // pred_region
      %s293 = ssub.s32 %s10, 2
      // Predicated region
      $region37: #{tpu_custom_call.1} parent=35 // pred_check
        %p294 = pneg %p91
      $region38: #{tpu_custom_call.1} parent=35 // pred_check_branch
        %296 = sbr.rel (%p294) target = $region40
      $region39: #{tpu_custom_call.1} parent=35 // pred_region
        %p297 = scmp.lt.s32.totalorder %s16, 1
        %s298 = scalar_select %p297, %s16, 1
        %s299 = smul.addr %s298, 8
        %s300 = smul.addr %s299, 4
        %s301 = scalar_lea.vmem %s3, %s300
      $region40: #{tpu_custom_call.1} parent=35 // pred_fallthru
        _
    $region36: #{tpu_custom_call.1} parent=5 // pred_fallthru
      _
  $region6: #{tpu_custom_call.1} parent=0 // loop_footer
    %s14 = sadd.s32 1, %s10
  $region7: #{tpu_custom_call.1} parent=0 // loop_footer_branch
    %9 = sbr.rel target = $region3
  $region8: #{tpu_custom_call.1} parent=0 // loop_exit
    _

</llo_original>
